<compile_context>
chip_gen: v6e
topology: v6e:2x2x1
jax: 0.10.0
libtpu: 0.0.40
codegen_flags: <defaults>
</compile_context>

<pallas_src>
import jax
import jax.numpy as jnp
from jax import lax
from jax.experimental import pallas as pl
from jax.experimental.pallas import tpu as pltpu

_LANES = 128
_SUB = 16                       # sublanes per chunk
_CHUNK = _SUB * _LANES          # 2048 elements per (16, 128) chunk
_MAX_BLK = 256                  # chunks per grid step (2 MiB f32 per input)
_SUB_BLK = 32                   # chunks per inner sub-slab (256 KiB f32 temps)


def _make_kernel(chunks, blk, sub, needs_mask):
    assert blk % sub == 0
    nsub = blk // sub

    def kernel(e_ref, g_ref, num_ref, den_ref, num_acc, den_acc):
        i = pl.program_id(0)

        @pl.when(i == 0)
        def _init():
            num_acc[...] = jnp.zeros_like(num_acc)
            den_acc[...] = jnp.zeros_like(den_acc)

        def accumulate(masked):
            def body(s, carry):
                start = pl.multiple_of(s * sub, sub)
                e = e_ref[pl.ds(start, sub)].astype(jnp.float32)   # (sub,16,128)
                g = g_ref[pl.ds(start, sub)].astype(jnp.float32)
                if masked:
                    # Only the overhanging chunk-rows of the final (partial)
                    # grid block hold garbage; zero their contribution before
                    # any math.  (sub, 1, 1) iota -> cheap broadcasted compare.
                    row = (lax.broadcasted_iota(jnp.int32, (sub, 1, 1), 0)
                           + i * blk + s * sub)
                    valid = row < chunks
                    g = jnp.where(valid, g, 0.0)
                    e = jnp.where(valid, e, 1.0)
                loss = -g * jnp.log(e + 1e-10)
                # Vreg-shaped accumulation: pure VPU adds in the hot loop.
                num_acc[...] += jnp.sum(loss, axis=0)
                den_acc[...] += jnp.sum(g, axis=0)
                return carry

            lax.fori_loop(0, nsub, body, 0, unroll=True)

        if needs_mask:
            last = pl.num_programs(0) - 1

            @pl.when(i < last)
            def _hot():
                accumulate(False)

            @pl.when(i == last)
            def _edge():
                accumulate(True)
        else:
            accumulate(False)

        @pl.when(i == pl.num_programs(0) - 1)
        def _finish():
            num_ref[...] = jnp.full((1, 1), jnp.sum(num_acc[...]), jnp.float32)
            den_ref[...] = jnp.full((1, 1), jnp.sum(den_acc[...]), jnp.float32)

    return kernel


def _bulk_partial_sums(e3, g3, chunks):
    """Streams (chunks, 16, 128) inputs; returns (sum(-g*log(e+eps)), sum(g))."""
    if chunks <= 64:
        blk, sub = chunks, chunks
    else:
        blk = min(_MAX_BLK, (chunks // _SUB_BLK) * _SUB_BLK)
        sub = _SUB_BLK
    steps = pl.cdiv(chunks, blk)
    needs_mask = (chunks % blk) != 0

    kernel = _make_kernel(chunks, blk, sub, needs_mask)
    n_elems = chunks * _CHUNK
    bytes_accessed = n_elems * (e3.dtype.itemsize + g3.dtype.itemsize) + 8

    num, den = pl.pallas_call(
        kernel,
        out_shape=(
            jax.ShapeDtypeStruct((1, 1), jnp.float32),
            jax.ShapeDtypeStruct((1, 1), jnp.float32),
        ),
        grid_spec=pltpu.PrefetchScalarGridSpec(
            num_scalar_prefetch=0,
            grid=(steps,),
            in_specs=[
                pl.BlockSpec((blk, _SUB, _LANES), lambda i: (i, 0, 0)),
                pl.BlockSpec((blk, _SUB, _LANES), lambda i: (i, 0, 0)),
            ],
            out_specs=[
                pl.BlockSpec((1, 1), lambda i: (0, 0)),
                pl.BlockSpec((1, 1), lambda i: (0, 0)),
            ],
            scratch_shapes=[
                pltpu.VMEM((_SUB, _LANES), jnp.float32),
                pltpu.VMEM((_SUB, _LANES), jnp.float32),
            ],
        ),
        compiler_params=pltpu.CompilerParams(
            dimension_semantics=("arbitrary",),
            vmem_limit_bytes=32 * 1024 * 1024,
        ),
        cost_estimate=pl.CostEstimate(
            flops=5 * n_elems,
            transcendentals=n_elems,
            bytes_accessed=bytes_accessed,
        ),
    )(e3, g3)
    return num[0, 0], den[0, 0]


@jax.jit
def inclusive_loss_edema(edema, gd_scar):
    assert edema.shape == gd_scar.shape
    n = edema.size

    e_flat = edema.reshape(-1)
    g_flat = gd_scar.reshape(-1)

    main = (n // _CHUNK) * _CHUNK
    num_total = jnp.float32(0.0)
    den_total = jnp.float32(0.0)

    if main:
        if main == n:
            e_bulk, g_bulk = e_flat, g_flat   # reshape below is a free bitcast
        else:
            # TODO(synk): this aligned-prefix slice still copies the bulk once
            # for ragged sizes; true zero-copy needs native-shape consumption.
            e_bulk, g_bulk = e_flat[:main], g_flat[:main]
        chunks = main // _CHUNK
        e3 = e_bulk.reshape(chunks, _SUB, _LANES)
        g3 = g_bulk.reshape(chunks, _SUB, _LANES)
        num, den = _bulk_partial_sums(e3, g3, chunks)
        num_total += num
        den_total += den

    if main != n:
        # <2048-element ragged tail: trivial jnp reduction (no full padded copy
        # of the inputs, unlike v1's jnp.concatenate).
        e_tail = e_flat[main:].astype(jnp.float32)
        g_tail = g_flat[main:].astype(jnp.float32)
        num_total += jnp.sum(-g_tail * jnp.log(e_tail + 1e-10))
        den_total += jnp.sum(g_tail)

    return num_total / (den_total + jnp.float32(1e-10))


def inclusive_loss_edema_ref(edema, gd_scar):
    e = edema.astype(jnp.float32)
    g = gd_scar.astype(jnp.float32)
    loss = -g * jnp.log(e + 1e-10)
    return loss.sum() / (g.sum() + 1e-10)


if __name__ == "__main__":
    key = jax.random.PRNGKey(0)
    k1, k2, k3, k4 = jax.random.split(key, 4)

    # Primary small case: NCHW (2, 4, 16, 16) -> n = 2048 (one aligned chunk).
    # Probability-like edema, binary-ish scar mask.
    B, C, H, W = 2, 4, 16, 16
    edema = jax.nn.sigmoid(jax.random.normal(k1, (B, C, H, W), jnp.float32))
    gd_scar = (jax.random.uniform(k2, (B, C, H, W)) < 0.3).astype(jnp.float32)

    out = inclusive_loss_edema(edema, gd_scar)
    jax.block_until_ready(out)
    ref = inclusive_loss_edema_ref(edema, gd_scar)
    assert jnp.allclose(out, ref, rtol=1e-5, atol=1e-6), (out, ref)

    # Larger ragged case: exercises multi-step accumulation, the masked final
    # grid block (258 chunks vs blk=256), and the <2048-element jnp tail path.
    B2, C2, H2, W2 = 2, 4, 257, 257
    edema2 = jax.nn.sigmoid(jax.random.normal(k3, (B2, C2, H2, W2), jnp.float32))
    gd2 = (jax.random.uniform(k4, (B2, C2, H2, W2)) < 0.3).astype(jnp.float32)
    out2 = inclusive_loss_edema(edema2, gd2)
    jax.block_until_ready(out2)
    ref2 = inclusive_loss_edema_ref(edema2, gd2)
    assert jnp.allclose(out2, ref2, rtol=1e-4, atol=1e-6), (out2, ref2)

    print("KERNEL_OK")
</pallas_src>

<mosaic_0001>
module attributes {stable_mosaic.version = 11 : i64} {
  func.func @kernel(%arg0: i32, %arg1: memref<1x16x128xf32, #tpu.memory_space<vmem>>, %arg2: memref<1x16x128xf32, #tpu.memory_space<vmem>>, %arg3: memref<1x1xf32, #tpu.memory_space<vmem>>, %arg4: memref<1x1xf32, #tpu.memory_space<vmem>>, %arg5: memref<16x128xf32, #tpu.memory_space<vmem>>, %arg6: memref<16x128xf32, #tpu.memory_space<vmem>>) attributes {dimension_semantics = [#tpu.dimension_semantics<arbitrary>], iteration_bounds = array<i64: 1>, scalar_prefetch = 0 : i64, scratch_operands = 2 : i64, tpu.core_type = #tpu.core_type<tc>, window_params = [{transform_indices = @transform_0, window_bounds = array<i64: 1, 16, 128>}, {transform_indices = @transform_1, window_bounds = array<i64: 1, 16, 128>}, {pipeline_mode = #tpu.pipeline_mode<synchronous>, transform_indices = @transform_2, window_bounds = array<i64: 1, 1>}, {pipeline_mode = #tpu.pipeline_mode<synchronous>, transform_indices = @transform_3, window_bounds = array<i64: 1, 1>}]} {
    %c0_i32 = arith.constant 0 : i32
    %0 = arith.cmpi eq, %arg0, %c0_i32 : i32
    %1 = arith.extui %0 : i1 to i32
    %c0_i32_0 = arith.constant 0 : i32
    %2 = arith.cmpi ne, %1, %c0_i32_0 : i32
    scf.if %2 {
      %cst_19 = arith.constant 0.000000e+00 : f32
      %26 = vector.broadcast %cst_19 : f32 to vector<16x128xf32>
      %c0_20 = arith.constant 0 : index
      %c0_21 = arith.constant 0 : index
      %27 = vector.load %arg5[%c0_20, %c0_21] : memref<16x128xf32, #tpu.memory_space<vmem>>, vector<16x128xf32>
      tpu.vector_store %arg5[%c0_20, %c0_21], %26 {strides = array<i32>} : memref<16x128xf32, #tpu.memory_space<vmem>>, vector<16x128xf32>,
      %cst_22 = arith.constant 0.000000e+00 : f32
      %28 = vector.broadcast %cst_22 : f32 to vector<16x128xf32>
      %c0_23 = arith.constant 0 : index
      %c0_24 = arith.constant 0 : index
      %29 = vector.load %arg6[%c0_23, %c0_24] : memref<16x128xf32, #tpu.memory_space<vmem>>, vector<16x128xf32>
      tpu.vector_store %arg6[%c0_23, %c0_24], %28 {strides = array<i32>} : memref<16x128xf32, #tpu.memory_space<vmem>>, vector<16x128xf32>,
    } else {
    }
    %c0_i32_1 = arith.constant 0 : i32
    %c1_i32 = arith.constant 1 : i32
    %3 = arith.muli %c0_i32_1, %c1_i32 : i32
    %4 = tpu.assume_multiple %3, 1 : i32
    %5 = arith.index_cast %4 : i32 to index
    %c0 = arith.constant 0 : index
    %c0_2 = arith.constant 0 : index
    %6 = vector.load %arg1[%5, %c0, %c0_2] : memref<1x16x128xf32, #tpu.memory_space<vmem>>, vector<1x16x128xf32>
    %7 = arith.index_cast %4 : i32 to index
    %c0_3 = arith.constant 0 : index
    %c0_4 = arith.constant 0 : index
    %8 = vector.load %arg2[%7, %c0_3, %c0_4] : memref<1x16x128xf32, #tpu.memory_space<vmem>>, vector<1x16x128xf32>
    %cst = arith.constant 0.000000e+00 : f32
    %9 = vector.broadcast %cst : f32 to vector<1x16x128xf32>
    %10 = arith.subf %9, %8 : vector<1x16x128xf32>
    %cst_5 = arith.constant 1.000000e-10 : f32
    %11 = vector.broadcast %cst_5 : f32 to vector<1x16x128xf32>
    %12 = arith.addf %6, %11 : vector<1x16x128xf32>
    %13 = math.log %12 : vector<1x16x128xf32>
    %14 = arith.mulf %10, %13 : vector<1x16x128xf32>
    %c0_6 = arith.constant 0 : index
    %c0_7 = arith.constant 0 : index
    %15 = vector.load %arg5[%c0_6, %c0_7] : memref<16x128xf32, #tpu.memory_space<vmem>>, vector<16x128xf32>
    %cst_8 = arith.constant dense<0.000000e+00> : vector<16x128xf32>
    %16 = vector.multi_reduction <add>, %14, %cst_8 [0] : vector<1x16x128xf32> to vector<16x128xf32>
    %17 = arith.addf %15, %16 : vector<16x128xf32>
    %c0_9 = arith.constant 0 : index
    %c0_10 = arith.constant 0 : index
    %18 = vector.load %arg5[%c0_9, %c0_10] : memref<16x128xf32, #tpu.memory_space<vmem>>, vector<16x128xf32>
    tpu.vector_store %arg5[%c0_9, %c0_10], %17 {strides = array<i32>} : memref<16x128xf32, #tpu.memory_space<vmem>>, vector<16x128xf32>,
    %c0_11 = arith.constant 0 : index
    %c0_12 = arith.constant 0 : index
    %19 = vector.load %arg6[%c0_11, %c0_12] : memref<16x128xf32, #tpu.memory_space<vmem>>, vector<16x128xf32>
    %cst_13 = arith.constant dense<0.000000e+00> : vector<16x128xf32>
    %20 = vector.multi_reduction <add>, %8, %cst_13 [0] : vector<1x16x128xf32> to vector<16x128xf32>
    %21 = arith.addf %19, %20 : vector<16x128xf32>
    %c0_14 = arith.constant 0 : index
    %c0_15 = arith.constant 0 : index
    %22 = vector.load %arg6[%c0_14, %c0_15] : memref<16x128xf32, #tpu.memory_space<vmem>>, vector<16x128xf32>
    tpu.vector_store %arg6[%c0_14, %c0_15], %21 {strides = array<i32>} : memref<16x128xf32, #tpu.memory_space<vmem>>, vector<16x128xf32>,
    %c1_i32_16 = arith.constant 1 : i32
    %c0_i32_17 = arith.constant 0 : i32
    %23 = arith.cmpi eq, %arg0, %c0_i32_17 : i32
    %24 = arith.extui %23 : i1 to i32
    %c0_i32_18 = arith.constant 0 : i32
    %25 = arith.cmpi ne, %24, %c0_i32_18 : i32
    scf.if %25 {
      %c0_19 = arith.constant 0 : index
      %c0_20 = arith.constant 0 : index
      %26 = vector.load %arg5[%c0_19, %c0_20] : memref<16x128xf32, #tpu.memory_space<vmem>>, vector<16x128xf32>
      %27 = vector.shape_cast %26 : vector<16x128xf32> to vector<1x16x128xf32>
      %cst_21 = arith.constant dense<0.000000e+00> : vector<1xf32>
      %28 = vector.multi_reduction <add>, %27, %cst_21 [1, 2] : vector<1x16x128xf32> to vector<1xf32>
      %29 = vector.shape_cast %28 : vector<1xf32> to vector<1x1x1xf32>
      %30 = vector.extract %29[0, 0, 0] : f32 from vector<1x1x1xf32>
      %31 = vector.broadcast %30 : f32 to vector<1x1xf32>
      %c0_22 = arith.constant 0 : index
      %c0_23 = arith.constant 0 : index
      %32 = vector.load %arg3[%c0_22, %c0_23] : memref<1x1xf32, #tpu.memory_space<vmem>>, vector<1x1xf32>
      tpu.vector_store %arg3[%c0_22, %c0_23], %31 {strides = array<i32>} : memref<1x1xf32, #tpu.memory_space<vmem>>, vector<1x1xf32>,
      %c0_24 = arith.constant 0 : index
      %c0_25 = arith.constant 0 : index
      %33 = vector.load %arg6[%c0_24, %c0_25] : memref<16x128xf32, #tpu.memory_space<vmem>>, vector<16x128xf32>
      %34 = vector.shape_cast %33 : vector<16x128xf32> to vector<1x16x128xf32>
      %cst_26 = arith.constant dense<0.000000e+00> : vector<1xf32>
      %35 = vector.multi_reduction <add>, %34, %cst_26 [1, 2] : vector<1x16x128xf32> to vector<1xf32>
      %36 = vector.shape_cast %35 : vector<1xf32> to vector<1x1x1xf32>
      %37 = vector.extract %36[0, 0, 0] : f32 from vector<1x1x1xf32>
      %38 = vector.broadcast %37 : f32 to vector<1x1xf32>
      %c0_27 = arith.constant 0 : index
      %c0_28 = arith.constant 0 : index
      %39 = vector.load %arg4[%c0_27, %c0_28] : memref<1x1xf32, #tpu.memory_space<vmem>>, vector<1x1xf32>
      tpu.vector_store %arg4[%c0_27, %c0_28], %38 {strides = array<i32>} : memref<1x1xf32, #tpu.memory_space<vmem>>, vector<1x1xf32>,
    } else {
    }
    return
  }
  func.func @transform_0(%arg0: i32) -> (i32, i32, i32) {
    %c0_i32 = arith.constant 0 : i32
    %c0_i32_0 = arith.constant 0 : i32
    %c0_i32_1 = arith.constant 0 : i32
    return %arg0, %c0_i32, %c0_i32_0 : i32, i32, i32
  }
  func.func @transform_1(%arg0: i32) -> (i32, i32, i32) {
    %c0_i32 = arith.constant 0 : i32
    %c0_i32_0 = arith.constant 0 : i32
    %c0_i32_1 = arith.constant 0 : i32
    return %arg0, %c0_i32, %c0_i32_0 : i32, i32, i32
  }
  func.func @transform_2(%arg0: i32) -> (i32, i32) {
    %c0_i32 = arith.constant 0 : i32
    %c0_i32_0 = arith.constant 0 : i32
    %c0_i32_1 = arith.constant 0 : i32
    return %c0_i32, %c0_i32_0 : i32, i32
  }
  func.func @transform_3(%arg0: i32) -> (i32, i32) {
    %c0_i32 = arith.constant 0 : i32
    %c0_i32_0 = arith.constant 0 : i32
    %c0_i32_1 = arith.constant 0 : i32
    return %c0_i32, %c0_i32_0 : i32, i32
  }
}

</mosaic_0001>

<llo_original>
// kernel: inclusive_loss_edema.1
$region0: #{inclusive_loss_edema.1}
  #allocation0 [shape = 'u32[]', space=smem, size = 0x4, offset = 0x4, fixed_abs, tag = 'smem constant byte address 0x4 - core index']
  #allocation1 [shape = 'u32[144,128]{1,0:T(1,128)}', space=vmem, size = 0x12000, scoped, tag = 'internal scratch']
  #allocation2 [shape = 'f32[16,128]{1,0:T(8,128)}', space=vmem, size = 0x2000, scoped, tag = 'scratch operand']
  #allocation3 [shape = 'f32[16,128]{1,0:T(8,128)}', space=vmem, size = 0x2000, scoped, tag = 'scratch operand']
  %s0 = inlined_call_operand.vmem [shape: f32[1,16,128], index: 0, kind: input, shape index: {}]
  %s1 = inlined_call_operand.vmem [shape: f32[1,16,128], index: 1, kind: input, shape index: {}]
  %s2 = inlined_call_operand.hbm [shape: f32[1,1], index: 2, kind: output, shape index: {0}]
  %s3 = inlined_call_operand.hbm [shape: f32[1,1], index: 3, kind: output, shape index: {1}]
  %4 = xla_tuple %s2, %s3
  %s5 = sld [smem:[#allocation0]]
  $region34: #{inclusive_loss_edema.1} parent=0
    _
  %s7 = ssub.s32 1, %s5
  %s8 = scalar_select 0, %s7, %s5
  $region1: #{inclusive_loss_edema.1} parent=0
    #allocation4 [shape = 'u8[512]{0}', space=vmem, size = 0x400, scoped, tag = 'output window, operand 0, single buffered']
    #allocation5 [shape = 's32[1]{0}', space=sflag, size = 0x4, scoped, tag = 'scoped memory for inclusive_loss_edema.1']
    #allocation6 [shape = 'u8[512]{0}', space=vmem, size = 0x400, scoped, tag = 'output window, operand 1, single buffered']
    #allocation7 [shape = 's32[1]{0}', space=sflag, size = 0x4, scoped, tag = 'scoped memory for inclusive_loss_edema.1']
    %9 = vsyncpa [#allocation5], 0
    %10 = vsyncpa [#allocation7], 0
    // Predicated region
    $region2: #{inclusive_loss_edema.1} parent=1 // pred_check
      _
    $region3: #{inclusive_loss_edema.1} parent=1 // pred_check_branch
      %12 = sbr.rel (0) target = $region5
    $region4: #{inclusive_loss_edema.1} parent=1 // pred_region
      _
    $region5: #{inclusive_loss_edema.1} parent=1 // pred_fallthru
      _
    // Predicated region
    $region6: #{inclusive_loss_edema.1} parent=1 // pred_check
      _
    $region7: #{inclusive_loss_edema.1} parent=1 // pred_check_branch
      %14 = sbr.rel (0) target = $region9
    $region8: #{inclusive_loss_edema.1} parent=1 // pred_region
      _
    $region9: #{inclusive_loss_edema.1} parent=1 // pred_fallthru
      _
    %p15 = scmp.eq.s32.totalorder 0, 0
    // Predicated region
    $region10: #{inclusive_loss_edema.1} parent=1 // pred_check
      %p16 = pneg %p15
    $region11: #{inclusive_loss_edema.1} parent=1 // pred_check_branch
      %18 = sbr.rel (%p16) target = $region13
    $region12: #{inclusive_loss_edema.1} parent=1 // pred_region
      %19 = vst [vmem:[#allocation2] sm:$0xff] 0.0
      %20 = vst [vmem:[#allocation2 + $0x8] sm:$0xff] 0.0
      %21 = vst [vmem:[#allocation3] sm:$0xff] 0.0
      %22 = vst [vmem:[#allocation3 + $0x8] sm:$0xff] 0.0
    $region13: #{inclusive_loss_edema.1} parent=1 // pred_fallthru
      _
    %s23 = smul.u32 0, 16
    %s24 = scalar_lea.vmem %s0, %s23
    %v25 = vld [vmem:[%s24] sm:$0xff]
    %v26 = vld [vmem:[%s24 + $0x8] sm:$0xff]
    %s27 = scalar_lea.vmem %s1, %s23
    %v28 = vld [vmem:[%s27] sm:$0xff]
    %v29 = vld [vmem:[%s27 + $0x8] sm:$0xff]
    %v30 = vsub.f32 0.0, %v28
    %v31 = vsub.f32 0.0, %v29
    %v32 = vadd.f32 %v25, 1e-10
    %v33 = vadd.f32 %v26, 1e-10
    %v34 = vlog2.pop %v32
    %v35 = vmul.f32 %v34, 0.6931472
    %v36 = vlog2.pop %v33
    %v37 = vmul.f32 %v36, 0.6931472
    %v38 = vmul.f32 %v30, %v35
    %v39 = vmul.f32 %v31, %v37
    %v40 = vld [vmem:[#allocation2] sm:$0xff]
    %v41 = vld [vmem:[#allocation2 + $0x8] sm:$0xff]
    %v42 = vadd.f32 %v38, 0.0
    %v43 = vadd.f32 %v39, 0.0
    %v44 = vadd.f32 %v40, %v42
    %v45 = vadd.f32 %v41, %v43
    %46 = vst [vmem:[#allocation2] sm:$0xff] %v44
    %47 = vst [vmem:[#allocation2 + $0x8] sm:$0xff] %v45
    %v48 = vld [vmem:[#allocation3] sm:$0xff]
    %v49 = vld [vmem:[#allocation3 + $0x8] sm:$0xff]
    %v50 = vadd.f32 %v28, 0.0
    %v51 = vadd.f32 %v29, 0.0
    %v52 = vadd.f32 %v48, %v50
    %v53 = vadd.f32 %v49, %v51
    %54 = vst [vmem:[#allocation3] sm:$0xff] %v52
    %55 = vst [vmem:[#allocation3 + $0x8] sm:$0xff] %v53
    // Predicated region
    $region14: #{inclusive_loss_edema.1} parent=1 // pred_check
      %p56 = pneg %p15
    $region15: #{inclusive_loss_edema.1} parent=1 // pred_check_branch
      %58 = sbr.rel (%p56) target = $region17
    $region16: #{inclusive_loss_edema.1} parent=1 // pred_region
      %v59 = vld [vmem:[#allocation2] sm:$0xff]
      %v60 = vld [vmem:[#allocation2 + $0x8] sm:$0xff]
      %v61 = vadd.f32 %v59, %v60
      %62 = vadd.xlane.f32.xlu0 %v61
      %v63 = vpop.xlane.xlu0 %62
      %v64 = vrot.slane %v63, 4
      %v65 = vadd.f32 %v63, %v64
      %v66 = vrot.slane %v65, 2
      %v67 = vadd.f32 %v65, %v66
      %v68 = vrot.slane %v67, 1
      %v69 = vadd.f32 %v67, %v68
      %s70 = vtos %v69
      %v71 = vstv %s70
      %vm72 = vcmask 0
      %73 = vst.msk [vmem:[#allocation4] sm:$0x1] %vm72, %v71
      %v74 = vld [vmem:[#allocation3] sm:$0xff]
      %v75 = vld [vmem:[#allocation3 + $0x8] sm:$0xff]
      %v76 = vadd.f32 %v74, %v75
      %77 = vadd.xlane.f32.xlu0 %v76
      %v78 = vpop.xlane.xlu0 %77
      %v79 = vrot.slane %v78, 4
      %v80 = vadd.f32 %v78, %v79
      %v81 = vrot.slane %v80, 2
      %v82 = vadd.f32 %v80, %v81
      %v83 = vrot.slane %v82, 1
      %v84 = vadd.f32 %v82, %v83
      %s85 = vtos %v84
      %v86 = vstv %s85
      %87 = vst.msk [vmem:[#allocation6] sm:$0x1] %vm72, %v86
    $region17: #{inclusive_loss_edema.1} parent=1 // pred_fallthru
      _
    // Predicated region
    $region18: #{inclusive_loss_edema.1} parent=1 // pred_check
      _
    $region19: #{inclusive_loss_edema.1} parent=1 // pred_check_branch
      %89 = sbr.rel (0) target = $region21
    $region20: #{inclusive_loss_edema.1} parent=1 // pred_region
      %s91 = ssub.s32 16, 16
      %92 = vsyncadd [#allocation5], %s91
      %s94 = sshll.u32 [#allocation4], 4
      %s95 = int_to_ptr.vmem [resolvable:$true] %s94
      %97 = dma.vmem_to_hbm [thread:$0]  %s95, 16, %s2, [#allocation5]
    $region21: #{inclusive_loss_edema.1} parent=1 // pred_fallthru
      _
    // Predicated region
    $region22: #{inclusive_loss_edema.1} parent=1 // pred_check
      _
    $region23: #{inclusive_loss_edema.1} parent=1 // pred_check_branch
      %99 = sbr.rel (0) target = $region25
    $region24: #{inclusive_loss_edema.1} parent=1 // pred_region
      %s101 = ssub.s32 16, 16
      %102 = vsyncadd [#allocation7], %s101
      %s104 = sshll.u32 [#allocation6], 4
      %s105 = int_to_ptr.vmem [resolvable:$true] %s104
      %107 = dma.vmem_to_hbm [thread:$0]  %s105, 16, %s3, [#allocation7]
    $region25: #{inclusive_loss_edema.1} parent=1 // pred_fallthru
      _
    // Predicated region
    $region26: #{inclusive_loss_edema.1} parent=1 // pred_check
      _
    $region27: #{inclusive_loss_edema.1} parent=1 // pred_check_branch
      %109 = sbr.rel (0) target = $region29
    $region28: #{inclusive_loss_edema.1} parent=1 // pred_region
      %110 = dma.done [#allocation5], 16
    $region29: #{inclusive_loss_edema.1} parent=1 // pred_fallthru
      _
    // Predicated region
    $region30: #{inclusive_loss_edema.1} parent=1 // pred_check
      _
    $region31: #{inclusive_loss_edema.1} parent=1 // pred_check_branch
      %112 = sbr.rel (0) target = $region33
    $region32: #{inclusive_loss_edema.1} parent=1 // pred_region
      %113 = dma.done [#allocation7], 16
    $region33: #{inclusive_loss_edema.1} parent=1 // pred_fallthru
      _
    %114 = vsyncpa [#allocation5], 1
    %115 = vsyncpa [#allocation7], 1

</llo_original>
